<compile_context>
chip_gen: v7x
topology: tpu7x:2x2x1
jax: 0.10.0
libtpu: 0.0.40
codegen_flags: <defaults>
</compile_context>

<pallas_src>
from functools import partial

import jax
import jax.numpy as jnp
from jax.experimental import pallas as pl
from jax.experimental.pallas import tpu as pltpu

# ----------------------------- model config ---------------------------------
H = 32          # hidden size (stand-in for 768)
NH = 2          # attention heads
DH = H // NH    # head dim
FFN = 64        # feed-forward inner size
VOCAB = 100
MAX_POS = 32
CLS_ID = 1
SEP_ID = 2
EPS = 1e-5
LANE = 128      # TPU lane width; head output / bias slab padded to this

# rows of the packed bias / LN-parameter slab (shape (16, LANE), f32)
ROW_LN_EMB_G = 0
ROW_LN_EMB_B = 1
ROW_BQKV = 2       # 3*H wide
ROW_BO = 3
ROW_LN1_G = 4
ROW_LN1_B = 5
ROW_BFF1 = 6       # FFN wide
ROW_BFF2 = 7
ROW_LN2_G = 8
ROW_LN2_B = 9
ROW_HB1 = 10
ROW_HB2 = 11       # LANE wide (real bias in column 0)
BIAS_ROWS = 16     # padded to a multiple of 8 sublanes


# ----------------------------- fused Pallas kernel --------------------------
def _fused_encoder_head_kernel(
        x_ref, bias_ref,
        wqkv_ref, wo_ref, wff1_ref, wff2_ref, hw1_ref, hw2_ref,
        logits_ref,
        *, S, nh, dh):
    """One encoder layer + GLUE head for ONE sequence (S rows).

    x_ref:      (S, H)        embedded tokens of the current sequence (f32).
    bias_ref:   (16, LANE)    packed LN/bias parameters (f32).
    w*_ref:     bf16 weights  (constant index_map -> VMEM resident).
    logits_ref: (1, 8, LANE)  lane-dense logit slab; real logit at [0, 0, 0].
    """
    f32 = jnp.float32
    bf16 = jnp.bfloat16
    Hd = nh * dh

    def ln(x, g, b):
        mu = jnp.mean(x, axis=-1, keepdims=True)
        xc = x - mu
        var = jnp.mean(xc * xc, axis=-1, keepdims=True)
        return xc * jax.lax.rsqrt(var + EPS) * g + b

    # --- embedding layernorm (f32, rides VPU/XLU slots) ---
    x = ln(x_ref[...],
           bias_ref[ROW_LN_EMB_G:ROW_LN_EMB_G + 1, :Hd],
           bias_ref[ROW_LN_EMB_B:ROW_LN_EMB_B + 1, :Hd])          # (S, H) f32

    # --- fused Q/K/V projection: one MXU pass, bf16 in / f32 acc ---
    qkv = (jnp.dot(x.astype(bf16), wqkv_ref[...], preferred_element_type=f32)
           + bias_ref[ROW_BQKV:ROW_BQKV + 1, :3 * Hd])            # (S, 3H) f32

    # --- multi-head self-attention (whole sequence lives in this block) ---
    scale = 1.0 / float(dh) ** 0.5
    head_outs = []
    for h in range(nh):                                # static unroll, nh small
        q = qkv[:, h * dh:(h + 1) * dh]
        k = qkv[:, Hd + h * dh:Hd + (h + 1) * dh]
        v = qkv[:, 2 * Hd + h * dh:2 * Hd + (h + 1) * dh]
        s = jnp.einsum("qd,kd->qk", q.astype(bf16), k.astype(bf16),
                       preferred_element_type=f32) * scale         # (S, S) f32
        s = s - jnp.max(s, axis=-1, keepdims=True)
        p = jnp.exp(s)
        # EUP approx reciprocal: lands in an otherwise idle VLIW slot.
        p = p * pl.reciprocal(jnp.sum(p, axis=-1, keepdims=True), approx=True)
        head_outs.append(jnp.dot(p.astype(bf16), v.astype(bf16),
                                 preferred_element_type=f32))      # (S, dh)

    # Concatenate heads and do ONE full-K output projection (fills MXU K dim,
    # no per-head accumulate adds / long-lived accumulator).
    heads = jnp.concatenate(head_outs, axis=-1)                    # (S, H)
    attn = (jnp.dot(heads.astype(bf16), wo_ref[...], preferred_element_type=f32)
            + bias_ref[ROW_BO:ROW_BO + 1, :Hd])

    # --- residual + LN1 (f32) ---
    x1 = ln(x + attn,
            bias_ref[ROW_LN1_G:ROW_LN1_G + 1, :Hd],
            bias_ref[ROW_LN1_B:ROW_LN1_B + 1, :Hd])

    # --- feed forward ---
    ff = (jnp.dot(x1.astype(bf16), wff1_ref[...], preferred_element_type=f32)
          + bias_ref[ROW_BFF1:ROW_BFF1 + 1, :FFN])
    # TODO(synk): HF RoBERTa uses exact (erf) GELU; tanh-approx GELU used here.
    ff = jax.nn.gelu(ff)
    ff = (jnp.dot(ff.astype(bf16), wff2_ref[...], preferred_element_type=f32)
          + bias_ref[ROW_BFF2:ROW_BFF2 + 1, :Hd])

    # --- residual + LN2 (f32) ---
    x2 = ln(x1 + ff,
            bias_ref[ROW_LN2_G:ROW_LN2_G + 1, :Hd],
            bias_ref[ROW_LN2_B:ROW_LN2_B + 1, :Hd])

    # --- GLUE head on the CLS embedding = row 0 of this per-sequence block ---
    cls = x2[0:1, :]                                               # (1, H)
    h1 = jnp.tanh(jnp.dot(cls.astype(bf16), hw1_ref[...],
                          preferred_element_type=f32)
                  + bias_ref[ROW_HB1:ROW_HB1 + 1, :Hd])
    logit_row = (jnp.dot(h1.astype(bf16), hw2_ref[...],
                         preferred_element_type=f32)
                 + bias_ref[ROW_HB2:ROW_HB2 + 1, :])               # (1, LANE)
    # Broadcast to a full (8, LANE) slab -> unmasked lane/sublane-dense store.
    logits_ref[...] = jnp.broadcast_to(logit_row.reshape(1, 1, LANE),
                                       (1, 8, LANE))


# ----------------------------- model glue (plain JAX) -----------------------
def init_params(key):
    ks = jax.random.split(key, 16)
    n = lambda k, shape: (0.02 * jax.random.normal(k, shape)).astype(jnp.float32)
    return {
        "emb": n(ks[0], (VOCAB, H)),
        "pos": n(ks[1], (MAX_POS, H)),
        "ln_emb_g": jnp.ones((H,), jnp.float32),
        "ln_emb_b": jnp.zeros((H,), jnp.float32),
        "wq": n(ks[2], (H, H)), "bq": jnp.zeros((H,), jnp.float32),
        "wk": n(ks[3], (H, H)), "bk": jnp.zeros((H,), jnp.float32),
        "wv": n(ks[4], (H, H)), "bv": jnp.zeros((H,), jnp.float32),
        "wo": n(ks[5], (H, H)), "bo": jnp.zeros((H,), jnp.float32),
        "ln1_g": jnp.ones((H,), jnp.float32),
        "ln1_b": jnp.zeros((H,), jnp.float32),
        "w_ffn1": n(ks[6], (H, FFN)), "b_ffn1": jnp.zeros((FFN,), jnp.float32),
        "w_ffn2": n(ks[7], (FFN, H)), "b_ffn2": jnp.zeros((H,), jnp.float32),
        "ln2_g": jnp.ones((H,), jnp.float32),
        "ln2_b": jnp.zeros((H,), jnp.float32),
        "head_w1": n(ks[8], (H, H)), "head_b1": jnp.zeros((H,), jnp.float32),
        "head_w2": n(ks[9], (H, 1)), "head_b2": jnp.zeros((1,), jnp.float32),
    }


def build_pair(tokens_a, tokens_b):
    """Emulate tokenizer(a, b): [CLS] a [SEP] b  -> (B, 1+Sa+1+Sb) ids."""
    # TODO(synk): RoBERTa's real format is [CLS] a [SEP][SEP] b [SEP] with a
    # position-id offset (padding_idx+1) and an attention mask for padding;
    # simplified for the synthetic stand-in (both pairs share one length).
    B = tokens_a.shape[0]
    cls = jnp.full((B, 1), CLS_ID, jnp.int32)
    sep = jnp.full((B, 1), SEP_ID, jnp.int32)
    return jnp.concatenate([cls, tokens_a, sep, tokens_b], axis=1)


def _pack_bias_slab(params):
    """Pack all tiny LN/bias vectors into one (16, LANE) f32 slab."""
    slab = jnp.zeros((BIAS_ROWS, LANE), jnp.float32)

    def put(s, row, vec):
        return s.at[row, :vec.shape[0]].set(vec)

    slab = put(slab, ROW_LN_EMB_G, params["ln_emb_g"])
    slab = put(slab, ROW_LN_EMB_B, params["ln_emb_b"])
    bqkv = jnp.concatenate([params["bq"], params["bk"], params["bv"]])
    slab = put(slab, ROW_BQKV, bqkv)
    slab = put(slab, ROW_BO, params["bo"])
    slab = put(slab, ROW_LN1_G, params["ln1_g"])
    slab = put(slab, ROW_LN1_B, params["ln1_b"])
    slab = put(slab, ROW_BFF1, params["b_ffn1"])
    slab = put(slab, ROW_BFF2, params["b_ffn2"])
    slab = put(slab, ROW_LN2_G, params["ln2_g"])
    slab = put(slab, ROW_LN2_B, params["ln2_b"])
    slab = put(slab, ROW_HB1, params["head_b1"])
    slab = put(slab, ROW_HB2, params["head_b2"])     # column 0 only
    return slab


def model_forward(tokens_a, tokens_b, params):
    """Model.forward with swap_inputs=True: average of logits for the (a, b)
    pair and the swapped (b, a) pair.  Both passes are batched together so the
    fused encoder+head kernel launches exactly once.  Returns (B, 1)."""
    B = tokens_a.shape[0]
    ids = jnp.concatenate([build_pair(tokens_a, tokens_b),
                           build_pair(tokens_b, tokens_a)], axis=0)   # (2B, S)
    B2, S = ids.shape
    BS = B2 * S

    # Embedding-table gather + positional add stay in XLA (data-dependent
    # gather; one fused op), everything else runs inside the Pallas kernel.
    x = params["emb"][ids] + params["pos"][:S][None, :, :]            # (2B,S,H)
    x2d = x.reshape(BS, H).astype(jnp.float32)

    # bf16 weights (halve HBM traffic / VMEM residency; MXU fast path),
    # packed QKV weight -> one MXU pass in-kernel.
    bf16 = jnp.bfloat16
    wqkv = jnp.concatenate(
        [params["wq"], params["wk"], params["wv"]], axis=1).astype(bf16)
    wo = params["wo"].astype(bf16)
    wff1 = params["w_ffn1"].astype(bf16)
    wff2 = params["w_ffn2"].astype(bf16)
    hw1 = params["head_w1"].astype(bf16)
    # 1-wide head output padded to a full 128-lane slab (lane-dense store).
    hw2 = jnp.zeros((H, LANE), jnp.float32).at[:, :1].set(
        params["head_w2"]).astype(bf16)

    bias_slab = _pack_bias_slab(params)

    def const_spec(a):
        return pl.BlockSpec(a.shape, lambda i, _nd=a.ndim: (0,) * _nd)

    logits_pad = pl.pallas_call(
        partial(_fused_encoder_head_kernel, S=S, nh=NH, dh=DH),
        out_shape=jax.ShapeDtypeStruct((B2, 8, LANE), jnp.float32),
        grid=(B2,),
        in_specs=[
            # per-sequence row block: one sequence per grid step.
            pl.BlockSpec((S, H), lambda i: (i, 0)),
            # packed biases + weights: constant index maps -> VMEM resident.
            const_spec(bias_slab),
            const_spec(wqkv), const_spec(wo),
            const_spec(wff1), const_spec(wff2),
            const_spec(hw1), const_spec(hw2),
        ],
        out_specs=pl.BlockSpec((1, 8, LANE), lambda i: (i, 0, 0)),
        compiler_params=pltpu.CompilerParams(
            dimension_semantics=("parallel",),   # shards sequences across TCs
            vmem_limit_bytes=16 * 1024 * 1024,
        ),
    )(x2d, bias_slab, wqkv, wo, wff1, wff2, hw1, hw2)

    logits = logits_pad[:, 0, :1]               # (2B, 1): [(a,b) pass; (b,a) pass]
    return (logits[:B] + logits[B:]) * 0.5      # (B, 1)


# ----------------------------- main ------------------------------------------
if __name__ == "__main__":
    key = jax.random.PRNGKey(0)
    pkey, akey, bkey = jax.random.split(key, 3)
    params = init_params(pkey)

    B, SA = 2, 3   # batch of 2 sentence pairs, 3 "word" tokens each side
    tokens_a = jax.random.randint(akey, (B, SA), 3, VOCAB, dtype=jnp.int32)
    tokens_b = jax.random.randint(bkey, (B, SA), 3, VOCAB, dtype=jnp.int32)

    out = jax.jit(model_forward)(tokens_a, tokens_b, params)
    out = jax.block_until_ready(out)
    assert out.shape == (B, 1), out.shape
    assert bool(jnp.all(jnp.isfinite(out)))
    print("KERNEL_OK")
</pallas_src>

<mosaic_0001>
module attributes {stable_mosaic.version = 11 : i64} {
  func.func @_fused_encoder_head_kernel(%arg0: i32, %arg1: memref<8x32xf32, #tpu.memory_space<vmem>>, %arg2: memref<16x128xf32, #tpu.memory_space<vmem>>, %arg3: memref<32x96xbf16, #tpu.memory_space<vmem>>, %arg4: memref<32x32xbf16, #tpu.memory_space<vmem>>, %arg5: memref<32x64xbf16, #tpu.memory_space<vmem>>, %arg6: memref<64x32xbf16, #tpu.memory_space<vmem>>, %arg7: memref<32x32xbf16, #tpu.memory_space<vmem>>, %arg8: memref<32x128xbf16, #tpu.memory_space<vmem>>, %arg9: memref<1x8x128xf32, #tpu.memory_space<vmem>>) attributes {dimension_semantics = [#tpu.dimension_semantics<parallel>], iteration_bounds = array<i64: 4>, scalar_prefetch = 0 : i64, scratch_operands = 0 : i64, tpu.core_type = #tpu.core_type<tc>, window_params = [{transform_indices = @transform_0, window_bounds = array<i64: 8, 32>}, {pipeline_mode = #tpu.pipeline_mode<synchronous>, transform_indices = @transform_1, window_bounds = array<i64: 16, 128>}, {pipeline_mode = #tpu.pipeline_mode<synchronous>, transform_indices = @transform_2, window_bounds = array<i64: 32, 96>}, {pipeline_mode = #tpu.pipeline_mode<synchronous>, transform_indices = @transform_3, window_bounds = array<i64: 32, 32>}, {pipeline_mode = #tpu.pipeline_mode<synchronous>, transform_indices = @transform_4, window_bounds = array<i64: 32, 64>}, {pipeline_mode = #tpu.pipeline_mode<synchronous>, transform_indices = @transform_5, window_bounds = array<i64: 64, 32>}, {pipeline_mode = #tpu.pipeline_mode<synchronous>, transform_indices = @transform_6, window_bounds = array<i64: 32, 32>}, {pipeline_mode = #tpu.pipeline_mode<synchronous>, transform_indices = @transform_7, window_bounds = array<i64: 32, 128>}, {transform_indices = @transform_8, window_bounds = array<i64: 1, 8, 128>}]} {
    %c0 = arith.constant 0 : index
    %c0_0 = arith.constant 0 : index
    %0 = vector.load %arg1[%c0, %c0_0] : memref<8x32xf32, #tpu.memory_space<vmem>>, vector<8x32xf32>
    %c0_1 = arith.constant 0 : index
    %c0_2 = arith.constant 0 : index
    %1 = vector.load %arg2[%c0_1, %c0_2] : memref<16x128xf32, #tpu.memory_space<vmem>>, vector<1x32xf32>
    %c1 = arith.constant 1 : index
    %c0_3 = arith.constant 0 : index
    %2 = vector.load %arg2[%c1, %c0_3] : memref<16x128xf32, #tpu.memory_space<vmem>>, vector<1x32xf32>
    %cst = arith.constant dense<0.000000e+00> : vector<8xf32>
    %3 = vector.multi_reduction <add>, %0, %cst [1] : vector<8x32xf32> to vector<8xf32>
    %4 = vector.shape_cast %3 : vector<8xf32> to vector<8x1xf32>
    %cst_4 = arith.constant 3.200000e+01 : f32
    %5 = vector.broadcast %cst_4 : f32 to vector<8x1xf32>
    %6 = arith.divf %4, %5 : vector<8x1xf32>
    %7 = vector.broadcast %6 : vector<8x1xf32> to vector<8x32xf32>
    %8 = arith.subf %0, %7 : vector<8x32xf32>
    %9 = arith.mulf %8, %8 : vector<8x32xf32>
    %cst_5 = arith.constant dense<0.000000e+00> : vector<8xf32>
    %10 = vector.multi_reduction <add>, %9, %cst_5 [1] : vector<8x32xf32> to vector<8xf32>
    %11 = vector.shape_cast %10 : vector<8xf32> to vector<8x1xf32>
    %cst_6 = arith.constant 3.200000e+01 : f32
    %12 = vector.broadcast %cst_6 : f32 to vector<8x1xf32>
    %13 = arith.divf %11, %12 : vector<8x1xf32>
    %cst_7 = arith.constant 9.99999974E-6 : f32
    %14 = vector.broadcast %cst_7 : f32 to vector<8x1xf32>
    %15 = arith.addf %13, %14 : vector<8x1xf32>
    %16 = math.rsqrt %15 : vector<8x1xf32>
    %17 = vector.broadcast %16 : vector<8x1xf32> to vector<8x32xf32>
    %18 = arith.mulf %8, %17 : vector<8x32xf32>
    %19 = vector.broadcast %1 : vector<1x32xf32> to vector<8x32xf32>
    %20 = arith.mulf %18, %19 : vector<8x32xf32>
    %21 = vector.broadcast %2 : vector<1x32xf32> to vector<8x32xf32>
    %22 = arith.addf %20, %21 : vector<8x32xf32>
    %23 = arith.truncf %22 : vector<8x32xf32> to vector<8x32xbf16>
    %c0_8 = arith.constant 0 : index
    %c0_9 = arith.constant 0 : index
    %24 = vector.load %arg3[%c0_8, %c0_9] : memref<32x96xbf16, #tpu.memory_space<vmem>>, vector<32x96xbf16>
    %cst_10 = arith.constant dense<0.000000e+00> : vector<8x96xf32>
    %25 = tpu.matmul %23, %24, %cst_10 {dimension_numbers = #tpu.dot_dimension_numbers<[1], [0], [0], [1], [0, 0, 1, 1], [], []>} : vector<8x32xbf16>, vector<32x96xbf16>, vector<8x96xf32> -> vector<8x96xf32>
    %c2 = arith.constant 2 : index
    %c0_11 = arith.constant 0 : index
    %26 = vector.load %arg2[%c2, %c0_11] : memref<16x128xf32, #tpu.memory_space<vmem>>, vector<1x96xf32>
    %27 = vector.broadcast %26 : vector<1x96xf32> to vector<8x96xf32>
    %28 = arith.addf %25, %27 : vector<8x96xf32>
    %29 = vector.extract_strided_slice %28 {offsets = [0, 0], sizes = [8, 16], strides = [1, 1]} : vector<8x96xf32> to vector<8x16xf32>
    %30 = vector.extract_strided_slice %28 {offsets = [0, 32], sizes = [8, 16], strides = [1, 1]} : vector<8x96xf32> to vector<8x16xf32>
    %31 = vector.extract_strided_slice %28 {offsets = [0, 64], sizes = [8, 16], strides = [1, 1]} : vector<8x96xf32> to vector<8x16xf32>
    %32 = arith.truncf %29 : vector<8x16xf32> to vector<8x16xbf16>
    %33 = arith.truncf %30 : vector<8x16xf32> to vector<8x16xbf16>
    "tpu.trace_start"() <{level = 10 : i32, message = "qd,kd->qk"}> : () -> ()
    %cst_12 = arith.constant dense<0.000000e+00> : vector<8x8xf32>
    %34 = tpu.matmul %32, %33, %cst_12 {dimension_numbers = #tpu.dot_dimension_numbers<[1], [1], [0], [0], [0, 0, 1, 0], [], []>} : vector<8x16xbf16>, vector<8x16xbf16>, vector<8x8xf32> -> vector<8x8xf32>
    "tpu.trace_stop"() : () -> ()
    %cst_13 = arith.constant 2.500000e-01 : f32
    %35 = vector.broadcast %cst_13 : f32 to vector<8x8xf32>
    %36 = arith.mulf %34, %35 : vector<8x8xf32>
    %cst_14 = arith.constant dense<0xFF800000> : vector<8xf32>
    %37 = vector.multi_reduction <maximumf>, %36, %cst_14 [1] : vector<8x8xf32> to vector<8xf32>
    %38 = vector.shape_cast %37 : vector<8xf32> to vector<8x1xf32>
    %39 = vector.broadcast %38 : vector<8x1xf32> to vector<8x8xf32>
    %40 = arith.subf %36, %39 : vector<8x8xf32>
    %41 = math.exp %40 : vector<8x8xf32>
    %cst_15 = arith.constant dense<0.000000e+00> : vector<8xf32>
    %42 = vector.multi_reduction <add>, %41, %cst_15 [1] : vector<8x8xf32> to vector<8xf32>
    %43 = vector.shape_cast %42 : vector<8xf32> to vector<8x1xf32>
    %44 = tpu.reciprocal %43 {approx = true} : vector<8x1xf32> -> vector<8x1xf32>
    %45 = vector.broadcast %44 : vector<8x1xf32> to vector<8x8xf32>
    %46 = arith.mulf %41, %45 : vector<8x8xf32>
    %47 = arith.truncf %46 : vector<8x8xf32> to vector<8x8xbf16>
    %48 = arith.truncf %31 : vector<8x16xf32> to vector<8x16xbf16>
    %cst_16 = arith.constant dense<0.000000e+00> : vector<8x16xf32>
    %49 = tpu.matmul %47, %48, %cst_16 {dimension_numbers = #tpu.dot_dimension_numbers<[1], [0], [0], [1], [0, 0, 1, 1], [], []>} : vector<8x8xbf16>, vector<8x16xbf16>, vector<8x16xf32> -> vector<8x16xf32>
    %50 = vector.extract_strided_slice %28 {offsets = [0, 16], sizes = [8, 16], strides = [1, 1]} : vector<8x96xf32> to vector<8x16xf32>
    %51 = vector.extract_strided_slice %28 {offsets = [0, 48], sizes = [8, 16], strides = [1, 1]} : vector<8x96xf32> to vector<8x16xf32>
    %52 = vector.extract_strided_slice %28 {offsets = [0, 80], sizes = [8, 16], strides = [1, 1]} : vector<8x96xf32> to vector<8x16xf32>
    %53 = arith.truncf %50 : vector<8x16xf32> to vector<8x16xbf16>
    %54 = arith.truncf %51 : vector<8x16xf32> to vector<8x16xbf16>
    "tpu.trace_start"() <{level = 10 : i32, message = "qd,kd->qk"}> : () -> ()
    %cst_17 = arith.constant dense<0.000000e+00> : vector<8x8xf32>
    %55 = tpu.matmul %53, %54, %cst_17 {dimension_numbers = #tpu.dot_dimension_numbers<[1], [1], [0], [0], [0, 0, 1, 0], [], []>} : vector<8x16xbf16>, vector<8x16xbf16>, vector<8x8xf32> -> vector<8x8xf32>
    "tpu.trace_stop"() : () -> ()
    %cst_18 = arith.constant 2.500000e-01 : f32
    %56 = vector.broadcast %cst_18 : f32 to vector<8x8xf32>
    %57 = arith.mulf %55, %56 : vector<8x8xf32>
    %cst_19 = arith.constant dense<0xFF800000> : vector<8xf32>
    %58 = vector.multi_reduction <maximumf>, %57, %cst_19 [1] : vector<8x8xf32> to vector<8xf32>
    %59 = vector.shape_cast %58 : vector<8xf32> to vector<8x1xf32>
    %60 = vector.broadcast %59 : vector<8x1xf32> to vector<8x8xf32>
    %61 = arith.subf %57, %60 : vector<8x8xf32>
    %62 = math.exp %61 : vector<8x8xf32>
    %cst_20 = arith.constant dense<0.000000e+00> : vector<8xf32>
    %63 = vector.multi_reduction <add>, %62, %cst_20 [1] : vector<8x8xf32> to vector<8xf32>
    %64 = vector.shape_cast %63 : vector<8xf32> to vector<8x1xf32>
    %65 = tpu.reciprocal %64 {approx = true} : vector<8x1xf32> -> vector<8x1xf32>
    %66 = vector.broadcast %65 : vector<8x1xf32> to vector<8x8xf32>
    %67 = arith.mulf %62, %66 : vector<8x8xf32>
    %68 = arith.truncf %67 : vector<8x8xf32> to vector<8x8xbf16>
    %69 = arith.truncf %52 : vector<8x16xf32> to vector<8x16xbf16>
    %cst_21 = arith.constant dense<0.000000e+00> : vector<8x16xf32>
    %70 = tpu.matmul %68, %69, %cst_21 {dimension_numbers = #tpu.dot_dimension_numbers<[1], [0], [0], [1], [0, 0, 1, 1], [], []>} : vector<8x8xbf16>, vector<8x16xbf16>, vector<8x16xf32> -> vector<8x16xf32>
    %71 = tpu.concatenate %49, %70 in 1 : vector<8x16xf32>, vector<8x16xf32> -> vector<8x32xf32>
    %72 = arith.truncf %71 : vector<8x32xf32> to vector<8x32xbf16>
    %c0_22 = arith.constant 0 : index
    %c0_23 = arith.constant 0 : index
    %73 = vector.load %arg4[%c0_22, %c0_23] : memref<32x32xbf16, #tpu.memory_space<vmem>>, vector<32x32xbf16>
    %cst_24 = arith.constant dense<0.000000e+00> : vector<8x32xf32>
    %74 = tpu.matmul %72, %73, %cst_24 {dimension_numbers = #tpu.dot_dimension_numbers<[1], [0], [0], [1], [0, 0, 1, 1], [], []>} : vector<8x32xbf16>, vector<32x32xbf16>, vector<8x32xf32> -> vector<8x32xf32>
    %c3 = arith.constant 3 : index
    %c0_25 = arith.constant 0 : index
    %75 = vector.load %arg2[%c3, %c0_25] : memref<16x128xf32, #tpu.memory_space<vmem>>, vector<1x32xf32>
    %76 = vector.broadcast %75 : vector<1x32xf32> to vector<8x32xf32>
    %77 = arith.addf %74, %76 : vector<8x32xf32>
    %78 = arith.addf %22, %77 : vector<8x32xf32>
    %c4 = arith.constant 4 : index
    %c0_26 = arith.constant 0 : index
    %79 = vector.load %arg2[%c4, %c0_26] : memref<16x128xf32, #tpu.memory_space<vmem>>, vector<1x32xf32>
    %c5 = arith.constant 5 : index
    %c0_27 = arith.constant 0 : index
    %80 = vector.load %arg2[%c5, %c0_27] : memref<16x128xf32, #tpu.memory_space<vmem>>, vector<1x32xf32>
    %cst_28 = arith.constant dense<0.000000e+00> : vector<8xf32>
    %81 = vector.multi_reduction <add>, %78, %cst_28 [1] : vector<8x32xf32> to vector<8xf32>
    %82 = vector.shape_cast %81 : vector<8xf32> to vector<8x1xf32>
    %cst_29 = arith.constant 3.200000e+01 : f32
    %83 = vector.broadcast %cst_29 : f32 to vector<8x1xf32>
    %84 = arith.divf %82, %83 : vector<8x1xf32>
    %85 = vector.broadcast %84 : vector<8x1xf32> to vector<8x32xf32>
    %86 = arith.subf %78, %85 : vector<8x32xf32>
    %87 = arith.mulf %86, %86 : vector<8x32xf32>
    %cst_30 = arith.constant dense<0.000000e+00> : vector<8xf32>
    %88 = vector.multi_reduction <add>, %87, %cst_30 [1] : vector<8x32xf32> to vector<8xf32>
    %89 = vector.shape_cast %88 : vector<8xf32> to vector<8x1xf32>
    %cst_31 = arith.constant 3.200000e+01 : f32
    %90 = vector.broadcast %cst_31 : f32 to vector<8x1xf32>
    %91 = arith.divf %89, %90 : vector<8x1xf32>
    %cst_32 = arith.constant 9.99999974E-6 : f32
    %92 = vector.broadcast %cst_32 : f32 to vector<8x1xf32>
    %93 = arith.addf %91, %92 : vector<8x1xf32>
    %94 = math.rsqrt %93 : vector<8x1xf32>
    %95 = vector.broadcast %94 : vector<8x1xf32> to vector<8x32xf32>
    %96 = arith.mulf %86, %95 : vector<8x32xf32>
    %97 = vector.broadcast %79 : vector<1x32xf32> to vector<8x32xf32>
    %98 = arith.mulf %96, %97 : vector<8x32xf32>
    %99 = vector.broadcast %80 : vector<1x32xf32> to vector<8x32xf32>
    %100 = arith.addf %98, %99 : vector<8x32xf32>
    %101 = arith.truncf %100 : vector<8x32xf32> to vector<8x32xbf16>
    %c0_33 = arith.constant 0 : index
    %c0_34 = arith.constant 0 : index
    %102 = vector.load %arg5[%c0_33, %c0_34] : memref<32x64xbf16, #tpu.memory_space<vmem>>, vector<32x64xbf16>
    %cst_35 = arith.constant dense<0.000000e+00> : vector<8x64xf32>
    %103 = tpu.matmul %101, %102, %cst_35 {dimension_numbers = #tpu.dot_dimension_numbers<[1], [0], [0], [1], [0, 0, 1, 1], [], []>} : vector<8x32xbf16>, vector<32x64xbf16>, vector<8x64xf32> -> vector<8x64xf32>
    %c6 = arith.constant 6 : index
    %c0_36 = arith.constant 0 : index
    %104 = vector.load %arg2[%c6, %c0_36] : memref<16x128xf32, #tpu.memory_space<vmem>>, vector<1x64xf32>
    %105 = vector.broadcast %104 : vector<1x64xf32> to vector<8x64xf32>
    %106 = arith.addf %103, %105 : vector<8x64xf32>
    %107 = arith.mulf %106, %106 : vector<8x64xf32>
    %108 = arith.mulf %106, %107 : vector<8x64xf32>
    %cst_37 = arith.constant 4.471500e-02 : f32
    %109 = vector.broadcast %cst_37 : f32 to vector<8x64xf32>
    %110 = arith.mulf %109, %108 : vector<8x64xf32>
    %111 = arith.addf %106, %110 : vector<8x64xf32>
    %cst_38 = arith.constant 0.797884583 : f32
    %112 = vector.broadcast %cst_38 : f32 to vector<8x64xf32>
    %113 = arith.mulf %112, %111 : vector<8x64xf32>
    %114 = math.tanh %113 : vector<8x64xf32>
    %cst_39 = arith.constant 1.000000e+00 : f32
    %115 = vector.broadcast %cst_39 : f32 to vector<8x64xf32>
    %116 = arith.addf %115, %114 : vector<8x64xf32>
    %cst_40 = arith.constant 5.000000e-01 : f32
    %117 = vector.broadcast %cst_40 : f32 to vector<8x64xf32>
    %118 = arith.mulf %117, %116 : vector<8x64xf32>
    %119 = arith.mulf %106, %118 : vector<8x64xf32>
    %120 = arith.truncf %119 : vector<8x64xf32> to vector<8x64xbf16>
    %c0_41 = arith.constant 0 : index
    %c0_42 = arith.constant 0 : index
    %121 = vector.load %arg6[%c0_41, %c0_42] : memref<64x32xbf16, #tpu.memory_space<vmem>>, vector<64x32xbf16>
    %cst_43 = arith.constant dense<0.000000e+00> : vector<8x32xf32>
    %122 = tpu.matmul %120, %121, %cst_43 {dimension_numbers = #tpu.dot_dimension_numbers<[1], [0], [0], [1], [0, 0, 1, 1], [], []>} : vector<8x64xbf16>, vector<64x32xbf16>, vector<8x32xf32> -> vector<8x32xf32>
    %c7 = arith.constant 7 : index
    %c0_44 = arith.constant 0 : index
    %123 = vector.load %arg2[%c7, %c0_44] : memref<16x128xf32, #tpu.memory_space<vmem>>, vector<1x32xf32>
    %124 = vector.broadcast %123 : vector<1x32xf32> to vector<8x32xf32>
    %125 = arith.addf %122, %124 : vector<8x32xf32>
    %126 = arith.addf %100, %125 : vector<8x32xf32>
    %c8 = arith.constant 8 : index
    %c0_45 = arith.constant 0 : index
    %127 = vector.load %arg2[%c8, %c0_45] : memref<16x128xf32, #tpu.memory_space<vmem>>, vector<1x32xf32>
    %c9 = arith.constant 9 : index
    %c0_46 = arith.constant 0 : index
    %128 = vector.load %arg2[%c9, %c0_46] : memref<16x128xf32, #tpu.memory_space<vmem>>, vector<1x32xf32>
    %cst_47 = arith.constant dense<0.000000e+00> : vector<8xf32>
    %129 = vector.multi_reduction <add>, %126, %cst_47 [1] : vector<8x32xf32> to vector<8xf32>
    %130 = vector.shape_cast %129 : vector<8xf32> to vector<8x1xf32>
    %cst_48 = arith.constant 3.200000e+01 : f32
    %131 = vector.broadcast %cst_48 : f32 to vector<8x1xf32>
    %132 = arith.divf %130, %131 : vector<8x1xf32>
    %133 = vector.broadcast %132 : vector<8x1xf32> to vector<8x32xf32>
    %134 = arith.subf %126, %133 : vector<8x32xf32>
    %135 = arith.mulf %134, %134 : vector<8x32xf32>
    %cst_49 = arith.constant dense<0.000000e+00> : vector<8xf32>
    %136 = vector.multi_reduction <add>, %135, %cst_49 [1] : vector<8x32xf32> to vector<8xf32>
    %137 = vector.shape_cast %136 : vector<8xf32> to vector<8x1xf32>
    %cst_50 = arith.constant 3.200000e+01 : f32
    %138 = vector.broadcast %cst_50 : f32 to vector<8x1xf32>
    %139 = arith.divf %137, %138 : vector<8x1xf32>
    %cst_51 = arith.constant 9.99999974E-6 : f32
    %140 = vector.broadcast %cst_51 : f32 to vector<8x1xf32>
    %141 = arith.addf %139, %140 : vector<8x1xf32>
    %142 = math.rsqrt %141 : vector<8x1xf32>
    %143 = vector.broadcast %142 : vector<8x1xf32> to vector<8x32xf32>
    %144 = arith.mulf %134, %143 : vector<8x32xf32>
    %145 = vector.broadcast %127 : vector<1x32xf32> to vector<8x32xf32>
    %146 = arith.mulf %144, %145 : vector<8x32xf32>
    %147 = vector.broadcast %128 : vector<1x32xf32> to vector<8x32xf32>
    %148 = arith.addf %146, %147 : vector<8x32xf32>
    %149 = vector.extract_strided_slice %148 {offsets = [0, 0], sizes = [1, 32], strides = [1, 1]} : vector<8x32xf32> to vector<1x32xf32>
    %150 = arith.truncf %149 : vector<1x32xf32> to vector<1x32xbf16>
    %c0_52 = arith.constant 0 : index
    %c0_53 = arith.constant 0 : index
    %151 = vector.load %arg7[%c0_52, %c0_53] : memref<32x32xbf16, #tpu.memory_space<vmem>>, vector<32x32xbf16>
    %cst_54 = arith.constant dense<0.000000e+00> : vector<1x32xf32>
    %152 = tpu.matmul %150, %151, %cst_54 {dimension_numbers = #tpu.dot_dimension_numbers<[1], [0], [0], [1], [0, 0, 1, 1], [], []>} : vector<1x32xbf16>, vector<32x32xbf16>, vector<1x32xf32> -> vector<1x32xf32>
    %c10 = arith.constant 10 : index
    %c0_55 = arith.constant 0 : index
    %153 = vector.load %arg2[%c10, %c0_55] : memref<16x128xf32, #tpu.memory_space<vmem>>, vector<1x32xf32>
    %154 = arith.addf %152, %153 : vector<1x32xf32>
    %155 = math.tanh %154 : vector<1x32xf32>
    %156 = arith.truncf %155 : vector<1x32xf32> to vector<1x32xbf16>
    %c0_56 = arith.constant 0 : index
    %c0_57 = arith.constant 0 : index
    %157 = vector.load %arg8[%c0_56, %c0_57] : memref<32x128xbf16, #tpu.memory_space<vmem>>, vector<32x128xbf16>
    %cst_58 = arith.constant dense<0.000000e+00> : vector<1x128xf32>
    %158 = tpu.matmul %156, %157, %cst_58 {dimension_numbers = #tpu.dot_dimension_numbers<[1], [0], [0], [1], [0, 0, 1, 1], [], []>} : vector<1x32xbf16>, vector<32x128xbf16>, vector<1x128xf32> -> vector<1x128xf32>
    %c11 = arith.constant 11 : index
    %c0_59 = arith.constant 0 : index
    %159 = vector.load %arg2[%c11, %c0_59] : memref<16x128xf32, #tpu.memory_space<vmem>>, vector<1x128xf32>
    %160 = arith.addf %158, %159 : vector<1x128xf32>
    %161 = vector.shape_cast %160 : vector<1x128xf32> to vector<1x1x128xf32>
    %162 = vector.shape_cast %161 : vector<1x1x128xf32> to vector<1x1x128xf32>
    %163 = vector.broadcast %162 : vector<1x1x128xf32> to vector<1x8x128xf32>
    %c0_60 = arith.constant 0 : index
    %c0_61 = arith.constant 0 : index
    %c0_62 = arith.constant 0 : index
    %164 = vector.load %arg9[%c0_60, %c0_61, %c0_62] : memref<1x8x128xf32, #tpu.memory_space<vmem>>, vector<1x8x128xf32>
    tpu.vector_store %arg9[%c0_60, %c0_61, %c0_62], %163 {strides = array<i32>} : memref<1x8x128xf32, #tpu.memory_space<vmem>>, vector<1x8x128xf32>,
    return
  }
  func.func @transform_0(%arg0: i32) -> (i32, i32) {
    %c0_i32 = arith.constant 0 : i32
    %c0_i32_0 = arith.constant 0 : i32
    return %arg0, %c0_i32 : i32, i32
  }
  func.func @transform_1(%arg0: i32) -> (i32, i32) {
    %c0_i32 = arith.constant 0 : i32
    %c0_i32_0 = arith.constant 0 : i32
    %c0_i32_1 = arith.constant 0 : i32
    return %c0_i32, %c0_i32_0 : i32, i32
  }
  func.func @transform_2(%arg0: i32) -> (i32, i32) {
    %c0_i32 = arith.constant 0 : i32
    %c0_i32_0 = arith.constant 0 : i32
    %c0_i32_1 = arith.constant 0 : i32
    return %c0_i32, %c0_i32_0 : i32, i32
  }
  func.func @transform_3(%arg0: i32) -> (i32, i32) {
    %c0_i32 = arith.constant 0 : i32
    %c0_i32_0 = arith.constant 0 : i32
    %c0_i32_1 = arith.constant 0 : i32
    return %c0_i32, %c0_i32_0 : i32, i32
  }
  func.func @transform_4(%arg0: i32) -> (i32, i32) {
    %c0_i32 = arith.constant 0 : i32
    %c0_i32_0 = arith.constant 0 : i32
    %c0_i32_1 = arith.constant 0 : i32
    return %c0_i32, %c0_i32_0 : i32, i32
  }
  func.func @transform_5(%arg0: i32) -> (i32, i32) {
    %c0_i32 = arith.constant 0 : i32
    %c0_i32_0 = arith.constant 0 : i32
    %c0_i32_1 = arith.constant 0 : i32
    return %c0_i32, %c0_i32_0 : i32, i32
  }
  func.func @transform_6(%arg0: i32) -> (i32, i32) {
    %c0_i32 = arith.constant 0 : i32
    %c0_i32_0 = arith.constant 0 : i32
    %c0_i32_1 = arith.constant 0 : i32
    return %c0_i32, %c0_i32_0 : i32, i32
  }
  func.func @transform_7(%arg0: i32) -> (i32, i32) {
    %c0_i32 = arith.constant 0 : i32
    %c0_i32_0 = arith.constant 0 : i32
    %c0_i32_1 = arith.constant 0 : i32
    return %c0_i32, %c0_i32_0 : i32, i32
  }
  func.func @transform_8(%arg0: i32) -> (i32, i32, i32) {
    %c0_i32 = arith.constant 0 : i32
    %c0_i32_0 = arith.constant 0 : i32
    %c0_i32_1 = arith.constant 0 : i32
    return %arg0, %c0_i32, %c0_i32_0 : i32, i32, i32
  }
}

</mosaic_0001>

<llo_original>
// kernel: model_forward.1
$region0: #{model_forward.1}
  #allocation0 [shape = 'u32[]', space=smem, size = 0x4, offset = 0x4, fixed_abs, tag = 'smem constant byte address 0x4 - core index']
  #allocation1 [shape = 'u32[144,128]{1,0:T(1,128)}', space=vmem, size = 0x12000, scoped, tag = 'internal scratch']
  %s0 = inlined_call_operand.vmem [shape: f32[32,32], index: 0, kind: input, shape index: {}]
  %s1 = inlined_call_operand.vmem [shape: f32[16,128], index: 1, kind: input, shape index: {}]
  %s2 = inlined_call_operand.vmem [shape: bf16[32,96], index: 2, kind: input, shape index: {}]
  %s3 = inlined_call_operand.vmem [shape: bf16[32,32], index: 3, kind: input, shape index: {}]
  %s4 = inlined_call_operand.vmem [shape: bf16[32,64], index: 4, kind: input, shape index: {}]
  %s5 = inlined_call_operand.vmem [shape: bf16[64,32], index: 5, kind: input, shape index: {}]
  %s6 = inlined_call_operand.vmem [shape: bf16[32,32], index: 6, kind: input, shape index: {}]
  %s7 = inlined_call_operand.vmem [shape: bf16[32,128], index: 7, kind: input, shape index: {}]
  %s8 = inlined_call_operand.vmem [shape: f32[4,8,128], index: 8, kind: output, shape index: {}]
  %s9 = sld [smem:[#allocation0]]
  $region65: #{model_forward.1} parent=0
    _
  %s11 = ssub.s32 1, %s9
  %s12 = scalar_select 0, %s11, %s9
  loop: start=0, step=1, limit=6
  $region2: #{model_forward.1} parent=0 // loop_pre_header
    _
  $region3: #{model_forward.1} parent=0 // loop_header
    %s14 = sphi 0, %s18
    %p15 = scmp.ge.s32.totalorder %s14, 6
    %s24 = sphi 0, %s26
    %s27 = sphi 0, %s24
    %s28 = sphi 0, %s27
    %s44 = sphi 0, %s28
    %s48 = sphi 0, %s48
    %s50 = sphi 0, %s48
    %s51 = sphi 0, %s50
    %s65 = sphi 0, %s51
    %s69 = sphi 0, %s69
    %s71 = sphi 0, %s69
    %s72 = sphi 0, %s71
    %s86 = sphi 0, %s72
    %s90 = sphi 0, %s90
    %s92 = sphi 0, %s90
    %s93 = sphi 0, %s92
    %s107 = sphi 0, %s93
    %s111 = sphi 0, %s111
    %s113 = sphi 0, %s111
    %s114 = sphi 0, %s113
    %s128 = sphi 0, %s114
    %s132 = sphi 0, %s132
    %s134 = sphi 0, %s132
    %s135 = sphi 0, %s134
    %s149 = sphi 0, %s135
    %s153 = sphi 0, %s153
    %s155 = sphi 0, %s153
    %s156 = sphi 0, %s155
    %s170 = sphi 0, %s156
    %s174 = sphi 0, %s174
    %s176 = sphi 0, %s174
    %s177 = sphi 0, %s176
    %s191 = sphi 0, %s177
    %s197 = sphi 0, %s199
    %s200 = sphi 0, %s197
    %s201 = sphi 0, %s200
    %s217 = sphi 0, %s201
  $region4: #{model_forward.1} parent=0 // loop_header_branch
    %17 = sbr.rel (%p15) target = $region8
  $region5: #{model_forward.1} parent=0 // loop_body
    %s19 = ssub.s32 %s14, 1
    %s20 = ssub.s32 %s14, 2
    %s21 = sadd.s32 %s14, 1
    %s22 = ssub.s32 %s14, %s21
    %p23 = scmp.eq.s32.totalorder %s22, 0
    %s25 = sadd.s32 %s24, 1
    %s26 = scalar_select %p23, %s24, %s25
    %p29 = pneg %p23
    %p30 = scmp.eq.s32.totalorder %s14, 3
    %p31 = por %p29, %p30
    %p32 = scmp.ne.s32.totalorder %s24, %s27
    %p33 = scmp.eq.s32.totalorder %s14, 0
    %p34 = por %p32, %p33
    %p35 = scmp.ne.s32.totalorder %s24, %s27
    %p36 = scmp.eq.s32.totalorder %s19, 3
    %p37 = por %p35, %p36
    %p38 = scmp.ne.s32.totalorder %s27, %s28
    %p39 = scmp.eq.s32.totalorder %s19, 0
    %p40 = por %p38, %p39
    %p41 = scmp.ne.s32.totalorder %s27, %s28
    %p42 = scmp.eq.s32.totalorder %s20, 3
    %p43 = por %p41, %p42
    %p45 = scmp.ne.s32.totalorder %s28, %s44
    %p46 = scmp.eq.s32.totalorder %s20, 0
    %p47 = por %p45, %p46
    %s49 = sadd.s32 %s48, 1
    %p52 = scmp.eq.s32.totalorder %s14, 3
    %p53 = scmp.ne.s32.totalorder %s48, %s50
    %p54 = scmp.eq.s32.totalorder %s14, 0
    %p55 = por %p53, %p54
    %p56 = scmp.ne.s32.totalorder %s48, %s50
    %p57 = scmp.eq.s32.totalorder %s19, 3
    %p58 = por %p56, %p57
    %p59 = scmp.ne.s32.totalorder %s50, %s51
    %p60 = scmp.eq.s32.totalorder %s19, 0
    %p61 = por %p59, %p60
    %p62 = scmp.ne.s32.totalorder %s50, %s51
    %p63 = scmp.eq.s32.totalorder %s20, 3
    %p64 = por %p62, %p63
    %p66 = scmp.ne.s32.totalorder %s51, %s65
    %p67 = scmp.eq.s32.totalorder %s20, 0
    %p68 = por %p66, %p67
    %s70 = sadd.s32 %s69, 1
    %p73 = scmp.eq.s32.totalorder %s14, 3
    %p74 = scmp.ne.s32.totalorder %s69, %s71
    %p75 = scmp.eq.s32.totalorder %s14, 0
    %p76 = por %p74, %p75
    %p77 = scmp.ne.s32.totalorder %s69, %s71
    %p78 = scmp.eq.s32.totalorder %s19, 3
    %p79 = por %p77, %p78
    %p80 = scmp.ne.s32.totalorder %s71, %s72
    %p81 = scmp.eq.s32.totalorder %s19, 0
    %p82 = por %p80, %p81
    %p83 = scmp.ne.s32.totalorder %s71, %s72
    %p84 = scmp.eq.s32.totalorder %s20, 3
    %p85 = por %p83, %p84
    %p87 = scmp.ne.s32.totalorder %s72, %s86
    %p88 = scmp.eq.s32.totalorder %s20, 0
    %p89 = por %p87, %p88
    %s91 = sadd.s32 %s90, 1
    %p94 = scmp.eq.s32.totalorder %s14, 3
    %p95 = scmp.ne.s32.totalorder %s90, %s92
    %p96 = scmp.eq.s32.totalorder %s14, 0
    %p97 = por %p95, %p96
    %p98 = scmp.ne.s32.totalorder %s90, %s92
    %p99 = scmp.eq.s32.totalorder %s19, 3
    %p100 = por %p98, %p99
    %p101 = scmp.ne.s32.totalorder %s92, %s93
    %p102 = scmp.eq.s32.totalorder %s19, 0
    %p103 = por %p101, %p102
    %p104 = scmp.ne.s32.totalorder %s92, %s93
    %p105 = scmp.eq.s32.totalorder %s20, 3
    %p106 = por %p104, %p105
    %p108 = scmp.ne.s32.totalorder %s93, %s107
    %p109 = scmp.eq.s32.totalorder %s20, 0
    %p110 = por %p108, %p109
    %s112 = sadd.s32 %s111, 1
    %p115 = scmp.eq.s32.totalorder %s14, 3
    %p116 = scmp.ne.s32.totalorder %s111, %s113
    %p117 = scmp.eq.s32.totalorder %s14, 0
    %p118 = por %p116, %p117
    %p119 = scmp.ne.s32.totalorder %s111, %s113
    %p120 = scmp.eq.s32.totalorder %s19, 3
    %p121 = por %p119, %p120
    %p122 = scmp.ne.s32.totalorder %s113, %s114
    %p123 = scmp.eq.s32.totalorder %s19, 0
    %p124 = por %p122, %p123
    %p125 = scmp.ne.s32.totalorder %s113, %s114
    %p126 = scmp.eq.s32.totalorder %s20, 3
    %p127 = por %p125, %p126
    %p129 = scmp.ne.s32.totalorder %s114, %s128
    %p130 = scmp.eq.s32.totalorder %s20, 0
    %p131 = por %p129, %p130
    %s133 = sadd.s32 %s132, 1
    %p136 = scmp.eq.s32.totalorder %s14, 3
    %p137 = scmp.ne.s32.totalorder %s132, %s134
    %p138 = scmp.eq.s32.totalorder %s14, 0
    %p139 = por %p137, %p138
    %p140 = scmp.ne.s32.totalorder %s132, %s134
    %p141 = scmp.eq.s32.totalorder %s19, 3
    %p142 = por %p140, %p141
    %p143 = scmp.ne.s32.totalorder %s134, %s135
    %p144 = scmp.eq.s32.totalorder %s19, 0
    %p145 = por %p143, %p144
    %p146 = scmp.ne.s32.totalorder %s134, %s135
    %p147 = scmp.eq.s32.totalorder %s20, 3
    %p148 = por %p146, %p147
    %p150 = scmp.ne.s32.totalorder %s135, %s149
    %p151 = scmp.eq.s32.totalorder %s20, 0
    %p152 = por %p150, %p151
    %s154 = sadd.s32 %s153, 1
    %p157 = scmp.eq.s32.totalorder %s14, 3
    %p158 = scmp.ne.s32.totalorder %s153, %s155
    %p159 = scmp.eq.s32.totalorder %s14, 0
    %p160 = por %p158, %p159
    %p161 = scmp.ne.s32.totalorder %s153, %s155
    %p162 = scmp.eq.s32.totalorder %s19, 3
    %p163 = por %p161, %p162
    %p164 = scmp.ne.s32.totalorder %s155, %s156
    %p165 = scmp.eq.s32.totalorder %s19, 0
    %p166 = por %p164, %p165
    %p167 = scmp.ne.s32.totalorder %s155, %s156
    %p168 = scmp.eq.s32.totalorder %s20, 3
    %p169 = por %p167, %p168
    %p171 = scmp.ne.s32.totalorder %s156, %s170
    %p172 = scmp.eq.s32.totalorder %s20, 0
    %p173 = por %p171, %p172
    %s175 = sadd.s32 %s174, 1
    %p178 = scmp.eq.s32.totalorder %s14, 3
    %p179 = scmp.ne.s32.totalorder %s174, %s176
    %p180 = scmp.eq.s32.totalorder %s14, 0
    %p181 = por %p179, %p180
    %p182 = scmp.ne.s32.totalorder %s174, %s176
    %p183 = scmp.eq.s32.totalorder %s19, 3
    %p184 = por %p182, %p183
    %p185 = scmp.ne.s32.totalorder %s176, %s177
    %p186 = scmp.eq.s32.totalorder %s19, 0
    %p187 = por %p185, %p186
    %p188 = scmp.ne.s32.totalorder %s176, %s177
    %p189 = scmp.eq.s32.totalorder %s20, 3
    %p190 = por %p188, %p189
    %p192 = scmp.ne.s32.totalorder %s177, %s191
    %p193 = scmp.eq.s32.totalorder %s20, 0
    %p194 = por %p192, %p193
    %s195 = ssub.s32 %s14, %s21
    %p196 = scmp.eq.s32.totalorder %s195, 0
    %s198 = sadd.s32 %s197, 1
    %s199 = scalar_select %p196, %s197, %s198
    %p202 = pneg %p196
    %p203 = scmp.eq.s32.totalorder %s14, 3
    %p204 = por %p202, %p203
    %p205 = scmp.ne.s32.totalorder %s197, %s200
    %p206 = scmp.eq.s32.totalorder %s14, 0
    %p207 = por %p205, %p206
    %p208 = scmp.ne.s32.totalorder %s197, %s200
    %p209 = scmp.eq.s32.totalorder %s19, 3
    %p210 = por %p208, %p209
    %p211 = scmp.ne.s32.totalorder %s200, %s201
    %p212 = scmp.eq.s32.totalorder %s19, 0
    %p213 = por %p211, %p212
    %p214 = scmp.ne.s32.totalorder %s200, %s201
    %p215 = scmp.eq.s32.totalorder %s20, 3
    %p216 = por %p214, %p215
    %p218 = scmp.ne.s32.totalorder %s201, %s217
    %p219 = scmp.eq.s32.totalorder %s20, 0
    %p220 = por %p218, %p219
    %p221 = scmp.le.s32.totalorder 1, %s14
    %p222 = scmp.lt.s32.totalorder %s14, 5
    %p223 = pnand %p221, %p222
    %p224 = pneg %p223
    // Predicated region
    $region9: #{model_forward.1} parent=5 // pred_check
      _
    $region10: #{model_forward.1} parent=5 // pred_check_branch
      %226 = sbr.rel (%p223) target = $region12
    $region11: #{model_forward.1} parent=5 // pred_region
      %s227 = ssub.s32 %s14, 1
      // Predicated region
      $region13: #{model_forward.1} parent=11 // pred_check
        %p228 = pneg %p61
      $region14: #{model_forward.1} parent=11 // pred_check_branch
        %230 = sbr.rel (%p228) target = $region16
      $region15: #{model_forward.1} parent=11 // pred_region
        _
      $region16: #{model_forward.1} parent=11 // pred_fallthru
        _
      // Predicated region
      $region17: #{model_forward.1} parent=11 // pred_check
        %p231 = pneg %p82
      $region18: #{model_forward.1} parent=11 // pred_check_branch
        %233 = sbr.rel (%p231) target = $region20
      $region19: #{model_forward.1} parent=11 // pred_region
        _
      $region20: #{model_forward.1} parent=11 // pred_fallthru
        _
      // Predicated region
      $region21: #{model_forward.1} parent=11 // pred_check
        %p234 = pneg %p103
      $region22: #{model_forward.1} parent=11 // pred_check_branch
        %236 = sbr.rel (%p234) target = $region24
      $region23: #{model_forward.1} parent=11 // pred_region
        _
      $region24: #{model_forward.1} parent=11 // pred_fallthru
        _
      // Predicated region
      $region25: #{model_forward.1} parent=11 // pred_check
        %p237 = pneg %p124
      $region26: #{model_forward.1} parent=11 // pred_check_branch
        %239 = sbr.rel (%p237) target = $region28
      $region27: #{model_forward.1} parent=11 // pred_region
        _
      $region28: #{model_forward.1} parent=11 // pred_fallthru
        _
      // Predicated region
      $region29: #{model_forward.1} parent=11 // pred_check
        %p240 = pneg %p145
      $region30: #{model_forward.1} parent=11 // pred_check_branch
        %242 = sbr.rel (%p240) target = $region32
      $region31: #{model_forward.1} parent=11 // pred_region
        _
      $region32: #{model_forward.1} parent=11 // pred_fallthru
        _
      // Predicated region
      $region33: #{model_forward.1} parent=11 // pred_check
        %p243 = pneg %p166
      $region34: #{model_forward.1} parent=11 // pred_check_branch
        %245 = sbr.rel (%p243) target = $region36
      $region35: #{model_forward.1} parent=11 // pred_region
        _
      $region36: #{model_forward.1} parent=11 // pred_fallthru
        _
      // Predicated region
      $region37: #{model_forward.1} parent=11 // pred_check
        %p246 = pneg %p187
      $region38: #{model_forward.1} parent=11 // pred_check_branch
        %248 = sbr.rel (%p246) target = $region40
      $region39: #{model_forward.1} parent=11 // pred_region
        _
      $region40: #{model_forward.1} parent=11 // pred_fallthru
        _
    $region12: #{model_forward.1} parent=5 // pred_fallthru
      _
    %p249 = scmp.lt.s32.totalorder %s14, 4
    // Predicated region
    $region41: #{model_forward.1} parent=5 // pred_check
      %p250 = pneg %p249
    $region42: #{model_forward.1} parent=5 // pred_check_branch
      %252 = sbr.rel (%p250) target = $region44
    $region43: #{model_forward.1} parent=5 // pred_region
      // Predicated region
      $region45: #{model_forward.1} parent=43 // pred_check
        %p253 = pneg %p34
      $region46: #{model_forward.1} parent=43 // pred_check_branch
        %255 = sbr.rel (%p253) target = $region48
      $region47: #{model_forward.1} parent=43 // pred_region
        %p256 = scmp.lt.s32.totalorder %s14, 3
        %s257 = scalar_select %p256, %s14, 3
        %s258 = smul.addr %s257, 8
        %s259 = scalar_lea.vmem %s0, %s258
      $region48: #{model_forward.1} parent=43 // pred_fallthru
        _
    $region44: #{model_forward.1} parent=5 // pred_fallthru
      _
    %p260 = scmp.le.s32.totalorder 1, %s14
    %p261 = scmp.lt.s32.totalorder %s14, 5
    %p262 = pnand %p260, %p261
    %p263 = pneg %p262
    // Predicated region
    $region49: #{model_forward.1} parent=5 // pred_check
      _
    $region50: #{model_forward.1} parent=5 // pred_check_branch
      %265 = sbr.rel (%p262) target = $region52
    $region51: #{model_forward.1} parent=5 // pred_region
      %s266 = ssub.s32 %s14, 1
      %p267 = scmp.lt.s32.totalorder %s19, 3
      %s268 = scalar_select %p267, %s19, 3
      %s269 = smul.addr %s268, 8
      %s270 = scalar_lea.vmem %s0, %s269
      %p271 = pneg %p40
      %p272 = pneg %p37
      %p273 = pneg %p61
      %p274 = pneg %p58
      %p275 = pneg %p82
      %p276 = pneg %p79
      %p277 = pneg %p103
      %p278 = pneg %p100
      %p279 = pneg %p124
      %p280 = pneg %p121
      %p281 = pneg %p145
      %p282 = pneg %p142
      %p283 = pneg %p166
      %p284 = pneg %p163
      %p285 = pneg %p187
      %p286 = pneg %p184
      %p287 = pneg %p213
      %p288 = pneg %p210
      %p289 = scmp.lt.s32.totalorder %s19, 3
      %s290 = scalar_select %p289, %s19, 3
      %s291 = smul.addr %s290, 8
      %s292 = scalar_lea.vmem %s8, %s291
      %p293 = scmp.lt.s32.totalorder %s19, 3
      %s294 = scalar_select %p293, %s19, 3
      %s295 = smul.addr %s294, 8
      %s296 = scalar_lea.vmem %s0, %s295
      %p297 = scmp.lt.s32.totalorder %s19, 3
      %s298 = scalar_select %p297, %s19, 3
      %s299 = smul.addr %s298, 8
      %s300 = scalar_lea.vmem %s8, %s299
      %v302 = vld [vmem:[%s296] sm:$0xff]
      %v303 = vld [vmem:[%s1] sm:$0x1]
      %v304 = vld [vmem:[%s1 + $0x1] sm:$0x1]
      %vm305 = vcmask 261120
      %v306 = vsel %vm305, %v302, 0.0
      %307 = vadd.xlane.f32.xlu0 %v306
      %v308 = vpop.xlane.xlu0 %307
      %v309 = vrcp.pop 32.0
      %v310 = vmul.f32 %v308, %v309
      %v311 = vsub.f32 %v302, %v310
      %v312 = vmul.f32 %v311, %v311
      %v313 = vsel %vm305, %v312, 0.0
      %314 = vadd.xlane.f32.xlu0 %v313
      %v315 = vpop.xlane.xlu0 %314
      %v316 = vmul.f32 %v315, %v309
      %v317 = vadd.f32 %v316, 1e-05
      %v318 = vrsqrt.pop %v317
      %v319 = vmul.f32 %v311, %v318
      %v320 = vlaneseq
      %v321 = vshrl.u32 %v320, 7
      %v322 = vsub.s32 0, %v321
      %v323 = vrot.slane %v303, %v322
      %v324 = vmul.f32 %v319, %v323
      %v325 = vlaneseq
      %v326 = vshrl.u32 %v325, 7
      %v327 = vsub.s32 0, %v326
      %v328 = vrot.slane %v304, %v327
      %v329 = vadd.f32 %v324, %v328
      %v330 = vpack.c.bf16 %v329, %v329
      %v331 = vld [vmem:[%s2] sm:$0xf]
      %v332 = vld [vmem:[%s2 + $0x4] sm:$0xf]
      %v333 = vld [vmem:[%s2 + $0x8] sm:$0xf]
      %v334 = vld [vmem:[%s2 + $0xc] sm:$0xf]
      %v335 = vld [vmem:[%s1 + $0x2] sm:$0x1]
      %v336 = vlaneseq
      %v337 = vshrl.u32 %v336, 7
      %v338 = vsub.s32 0, %v337
      %v339 = vrot.slane %v335, %v338
      %v344 = vunpack.c.l.b16 %v331
      %v345 = vunpack.c.l.b16 %v332
      %v346 = vunpack.c.l.b16 %v333
      %v347 = vunpack.c.l.b16 %v334
      %v348 = vpack.c.b16 %v345, %v344
      %v349 = vpack.c.b16 %v347, %v346
      %v353 = vsel %vm305, %v330, 0
      %355 = vmatprep.subr.bf16.mxu0 0
      %356 = vmatpush1.bf16.msra.mxu0 %v348
      %357 = vmatprep.subr.bf16.mxu0 0
      %358 = vmatpush1.bf16.msra.mxu0 %v349
      %359 = vmatprep.subr.bf16.mxu0 0
      %360 = vmatpush1.bf16.msra.mxu0 0
      %361 = vmatprep.subr.bf16.mxu0 0
      %362 = vmatpush1.bf16.msra.mxu0 0
      %363 = vmatprep.subr.bf16.mxu0 0
      %364 = vmatpush1.bf16.msra.mxu0 0
      %365 = vmatprep.subr.bf16.mxu0 0
      %366 = vmatpush1.bf16.msra.mxu0 0
      %367 = vmatprep.subr.bf16.mxu0 0
      %368 = vmatpush1.bf16.msra.mxu0 0
      %369 = vmatprep.subr.bf16.mxu0 0
      %370 = vmatpush1.bf16.msra.mxu0 0
      %371 = vmatprep.subr.bf16.mxu0 0
      %372 = vmatpush1.bf16.msra.mxu0 0
      %373 = vmatprep.subr.bf16.mxu0 0
      %374 = vmatpush1.bf16.msra.mxu0 0
      %375 = vmatprep.subr.bf16.mxu0 0
      %376 = vmatpush1.bf16.msra.mxu0 0
      %377 = vmatprep.subr.bf16.mxu0 0
      %378 = vmatpush1.bf16.msra.mxu0 0
      %379 = vmatprep.subr.bf16.mxu0 0
      %380 = vmatpush1.bf16.msra.mxu0 0
      %381 = vmatprep.subr.bf16.mxu0 0
      %382 = vmatpush1.bf16.msra.mxu0 0
      %383 = vmatprep.subr.bf16.mxu0 0
      %384 = vmatpush1.bf16.msra.mxu0 0
      %385 = vmatprep.subr.bf16.mxu0 0
      %386 = vmatpush1.bf16.msra.mxu0 0
      %387 = vmatprep.mubr.bf16.mxu0 0
      %388 = vmatmul.mubr.bf16.gmra.mrb[0].mxu0 %v353
      %v389 = vpop.f32.mrb[0].mxu0
      %v390 = vadd.f32 %v339, %v389
      %v391 = vpop.f32.mrb[0].mxu0
      %v392 = vpop.f32.mrb[0].mxu0
      %v393 = vpop.f32.mrb[0].mxu0
      %394 = vdwg.mxu0
      %v395 = vpack.c.bf16 %v390, %v390
      %397 = vrot.lane.b32.xlu0 %v395, 96
      %v398 = vpop.permute.xlu0 %397
      %vm399 = vcmask 130048
      %v401 = vsel %vm399, %v395, 0
      %v404 = vsel %vm399, %v398, 0
      %406 = vmatprep.subr.bf16.mxu0 0
      %407 = vmatpush1.bf16.xpose.msra.mxu0 %v404
      %408 = vmatprep.subr.bf16.mxu0 0
      %409 = vmatpush1.bf16.xpose.msra.mxu0 0
      %410 = vmatprep.subr.bf16.mxu0 0
      %411 = vmatpush1.bf16.xpose.msra.mxu0 0
      %412 = vmatprep.subr.bf16.mxu0 0
      %413 = vmatpush1.bf16.xpose.msra.mxu0 0
      %414 = vmatprep.subr.bf16.mxu0 0
      %415 = vmatpush1.bf16.xpose.msra.mxu0 0
      %416 = vmatprep.subr.bf16.mxu0 0
      %417 = vmatpush1.bf16.xpose.msra.mxu0 0
      %418 = vmatprep.subr.bf16.mxu0 0
      %419 = vmatpush1.bf16.xpose.msra.mxu0 0
      %420 = vmatprep.subr.bf16.mxu0 0
      %421 = vmatpush1.bf16.xpose.msra.mxu0 0
      %422 = vmatprep.subr.bf16.mxu0 0
      %423 = vmatpush1.bf16.xpose.msra.mxu0 0
      %424 = vmatprep.subr.bf16.mxu0 0
      %425 = vmatpush1.bf16.xpose.msra.mxu0 0
      %426 = vmatprep.subr.bf16.mxu0 0
      %427 = vmatpush1.bf16.xpose.msra.mxu0 0
      %428 = vmatprep.subr.bf16.mxu0 0
      %429 = vmatpush1.bf16.xpose.msra.mxu0 0
      %430 = vmatprep.subr.bf16.mxu0 0
      %431 = vmatpush1.bf16.xpose.msra.mxu0 0
      %432 = vmatprep.subr.bf16.mxu0 0
      %433 = vmatpush1.bf16.xpose.msra.mxu0 0
      %434 = vmatprep.subr.bf16.mxu0 0
      %435 = vmatpush1.bf16.xpose.msra.mxu0 0
      %436 = vmatprep.subr.bf16.mxu0 0
      %437 = vmatpush1.bf16.xpose.msra.mxu0 0
      %438 = vmatprep.mubr.bf16.mxu0 0
      %439 = vmatmul.mubr.bf16.gmra.mrb[0].mxu0 %v401
      %v440 = vpop.f32.mrb[0].mxu0
      %v441 = vadd.f32 0.0, %v440
      %v442 = vpop.f32.mrb[0].mxu0
      %v443 = vpop.f32.mrb[0].mxu0
      %v444 = vpop.f32.mrb[0].mxu0
      %445 = vdwg.mxu0
      %v446 = vmul.f32 %v441, 0.25
      %vm447 = vcmask 64512
      %v448 = vsel %vm447, %v446, -inf
      %449 = vmax.xlane.f32.xlu0 %v448
      %v450 = vpop.xlane.xlu0 %449
      %v451 = vsub.f32 %v446, %v450
      %v452 = vmul.f32 %v451, 1.442695
      %v453 = vpow.pop %v452
      %v454 = vsel %vm447, %v453, 0.0
      %455 = vadd.xlane.f32.xlu0 %v454
      %v456 = vpop.xlane.xlu0 %455
      %v457 = vrcp.pop %v456
      %v458 = vmul.f32 %v453, %v457
      %v459 = vpack.c.bf16 %v458, %v458
      %460 = vrot.lane.b32.xlu0 %v395, 64
      %v461 = vpop.permute.xlu0 %460
      %v463 = vsel %vm447, %v459, 0
      %vm465 = vcmask 1043456
      %v467 = vsel %vm465, %v461, 0
      %469 = vmatprep.subr.bf16.mxu0 0
      %470 = vmatpush1.bf16.msra.mxu0 %v467
      %471 = vmatprep.subr.bf16.mxu0 0
      %472 = vmatpush1.bf16.msra.mxu0 0
      %473 = vmatprep.subr.bf16.mxu0 0
      %474 = vmatpush1.bf16.msra.mxu0 0
      %475 = vmatprep.subr.bf16.mxu0 0
      %476 = vmatpush1.bf16.msra.mxu0 0
      %477 = vmatprep.subr.bf16.mxu0 0
      %478 = vmatpush1.bf16.msra.mxu0 0
      %479 = vmatprep.subr.bf16.mxu0 0
      %480 = vmatpush1.bf16.msra.mxu0 0
      %481 = vmatprep.subr.bf16.mxu0 0
      %482 = vmatpush1.bf16.msra.mxu0 0
      %483 = vmatprep.subr.bf16.mxu0 0
      %484 = vmatpush1.bf16.msra.mxu0 0
      %485 = vmatprep.subr.bf16.mxu0 0
      %486 = vmatpush1.bf16.msra.mxu0 0
      %487 = vmatprep.subr.bf16.mxu0 0
      %488 = vmatpush1.bf16.msra.mxu0 0
      %489 = vmatprep.subr.bf16.mxu0 0
      %490 = vmatpush1.bf16.msra.mxu0 0
      %491 = vmatprep.subr.bf16.mxu0 0
      %492 = vmatpush1.bf16.msra.mxu0 0
      %493 = vmatprep.subr.bf16.mxu0 0
      %494 = vmatpush1.bf16.msra.mxu0 0
      %495 = vmatprep.subr.bf16.mxu0 0
      %496 = vmatpush1.bf16.msra.mxu0 0
      %497 = vmatprep.subr.bf16.mxu0 0
      %498 = vmatpush1.bf16.msra.mxu0 0
      %499 = vmatprep.subr.bf16.mxu0 0
      %500 = vmatpush1.bf16.msra.mxu0 0
      %501 = vmatprep.mubr.bf16.mxu0 0
      %502 = vmatmul.mubr.bf16.gmra.mrb[0].mxu0 %v463
      %v503 = vpop.f32.mrb[0].mxu0
      %v504 = vadd.f32 0.0, %v503
      %v505 = vpop.f32.mrb[0].mxu0
      %v506 = vpop.f32.mrb[0].mxu0
      %v507 = vpop.f32.mrb[0].mxu0
      %508 = vdwg.mxu0
      %509 = vrot.lane.b32.xlu0 %v395, 112
      %v510 = vpop.permute.xlu0 %509
      %511 = vrot.lane.b32.xlu0 %v395, 80
      %v512 = vpop.permute.xlu0 %511
      %v514 = vsel %vm399, %v510, 0
      %v517 = vsel %vm399, %v512, 0
      %519 = vmatprep.subr.bf16.mxu0 0
      %520 = vmatpush1.bf16.xpose.msra.mxu0 %v517
      %521 = vmatprep.subr.bf16.mxu0 0
      %522 = vmatpush1.bf16.xpose.msra.mxu0 0
      %523 = vmatprep.subr.bf16.mxu0 0
      %524 = vmatpush1.bf16.xpose.msra.mxu0 0
      %525 = vmatprep.subr.bf16.mxu0 0
      %526 = vmatpush1.bf16.xpose.msra.mxu0 0
      %527 = vmatprep.subr.bf16.mxu0 0
      %528 = vmatpush1.bf16.xpose.msra.mxu0 0
      %529 = vmatprep.subr.bf16.mxu0 0
      %530 = vmatpush1.bf16.xpose.msra.mxu0 0
      %531 = vmatprep.subr.bf16.mxu0 0
      %532 = vmatpush1.bf16.xpose.msra.mxu0 0
      %533 = vmatprep.subr.bf16.mxu0 0
      %534 = vmatpush1.bf16.xpose.msra.mxu0 0
      %535 = vmatprep.subr.bf16.mxu0 0
      %536 = vmatpush1.bf16.xpose.msra.mxu0 0
      %537 = vmatprep.subr.bf16.mxu0 0
      %538 = vmatpush1.bf16.xpose.msra.mxu0 0
      %539 = vmatprep.subr.bf16.mxu0 0
      %540 = vmatpush1.bf16.xpose.msra.mxu0 0
      %541 = vmatprep.subr.bf16.mxu0 0
      %542 = vmatpush1.bf16.xpose.msra.mxu0 0
      %543 = vmatprep.subr.bf16.mxu0 0
      %544 = vmatpush1.bf16.xpose.msra.mxu0 0
      %545 = vmatprep.subr.bf16.mxu0 0
      %546 = vmatpush1.bf16.xpose.msra.mxu0 0
      %547 = vmatprep.subr.bf16.mxu0 0
      %548 = vmatpush1.bf16.xpose.msra.mxu0 0
      %549 = vmatprep.subr.bf16.mxu0 0
      %550 = vmatpush1.bf16.xpose.msra.mxu0 0
      %551 = vmatprep.mubr.bf16.mxu0 0
      %552 = vmatmul.mubr.bf16.gmra.mrb[0].mxu0 %v514
      %v553 = vpop.f32.mrb[0].mxu0
      %v554 = vadd.f32 0.0, %v553
      %v555 = vpop.f32.mrb[0].mxu0
      %v556 = vpop.f32.mrb[0].mxu0
      %v557 = vpop.f32.mrb[0].mxu0
      %558 = vdwg.mxu0
      %v559 = vmul.f32 %v554, 0.25
      %v560 = vsel %vm447, %v559, -inf
      %561 = vmax.xlane.f32.xlu0 %v560
      %v562 = vpop.xlane.xlu0 %561
      %v563 = vsub.f32 %v559, %v562
      %v564 = vmul.f32 %v563, 1.442695
      %v565 = vpow.pop %v564
      %v566 = vsel %vm447, %v565, 0.0
      %567 = vadd.xlane.f32.xlu0 %v566
      %v568 = vpop.xlane.xlu0 %567
      %v569 = vrcp.pop %v568
      %v570 = vmul.f32 %v565, %v569
      %v571 = vpack.c.bf16 %v570, %v570
      %572 = vrot.lane.b32.xlu0 %v395, 48
      %v573 = vpop.permute.xlu0 %572
      %v575 = vsel %vm447, %v571, 0
      %v578 = vsel %vm465, %v573, 0
      %580 = vmatprep.subr.bf16.mxu0 0
      %581 = vmatpush1.bf16.msra.mxu0 %v578
      %582 = vmatprep.subr.bf16.mxu0 0
      %583 = vmatpush1.bf16.msra.mxu0 0
      %584 = vmatprep.subr.bf16.mxu0 0
      %585 = vmatpush1.bf16.msra.mxu0 0
      %586 = vmatprep.subr.bf16.mxu0 0
      %587 = vmatpush1.bf16.msra.mxu0 0
      %588 = vmatprep.subr.bf16.mxu0 0
      %589 = vmatpush1.bf16.msra.mxu0 0
      %590 = vmatprep.subr.bf16.mxu0 0
      %591 = vmatpush1.bf16.msra.mxu0 0
      %592 = vmatprep.subr.bf16.mxu0 0
      %593 = vmatpush1.bf16.msra.mxu0 0
      %594 = vmatprep.subr.bf16.mxu0 0
      %595 = vmatpush1.bf16.msra.mxu0 0
      %596 = vmatprep.subr.bf16.mxu0 0
      %597 = vmatpush1.bf16.msra.mxu0 0
      %598 = vmatprep.subr.bf16.mxu0 0
      %599 = vmatpush1.bf16.msra.mxu0 0
      %600 = vmatprep.subr.bf16.mxu0 0
      %601 = vmatpush1.bf16.msra.mxu0 0
      %602 = vmatprep.subr.bf16.mxu0 0
      %603 = vmatpush1.bf16.msra.mxu0 0
      %604 = vmatprep.subr.bf16.mxu0 0
      %605 = vmatpush1.bf16.msra.mxu0 0
      %606 = vmatprep.subr.bf16.mxu0 0
      %607 = vmatpush1.bf16.msra.mxu0 0
      %608 = vmatprep.subr.bf16.mxu0 0
      %609 = vmatpush1.bf16.msra.mxu0 0
      %610 = vmatprep.subr.bf16.mxu0 0
      %611 = vmatpush1.bf16.msra.mxu0 0
      %612 = vmatprep.mubr.bf16.mxu0 0
      %613 = vmatmul.mubr.bf16.gmra.mrb[0].mxu0 %v575
      %v614 = vpop.f32.mrb[0].mxu0
      %v615 = vadd.f32 0.0, %v614
      %v616 = vpop.f32.mrb[0].mxu0
      %v617 = vpop.f32.mrb[0].mxu0
      %v618 = vpop.f32.mrb[0].mxu0
      %619 = vdwg.mxu0
      %621 = vrot.lane.b32.xlu0 %v615, 16
      %v622 = vpop.permute.xlu0 %621
      %v624 = vsel %vm399, %v504, %v622
      %v625 = vpack.c.bf16 %v624, %v624
      %v626 = vld [vmem:[%s3] sm:$0xf]
      %v627 = vld [vmem:[%s3 + $0x4] sm:$0xf]
      %v628 = vld [vmem:[%s3 + $0x8] sm:$0xf]
      %v629 = vld [vmem:[%s3 + $0xc] sm:$0xf]
      %v630 = vld [vmem:[%s1 + $0x3] sm:$0x1]
      %v631 = vlaneseq
      %v632 = vshrl.u32 %v631, 7
      %v633 = vsub.s32 0, %v632
      %v634 = vrot.slane %v630, %v633
      %v639 = vunpack.c.l.b16 %v626
      %v640 = vunpack.c.l.b16 %v627
      %v641 = vunpack.c.l.b16 %v628
      %v642 = vunpack.c.l.b16 %v629
      %v643 = vpack.c.b16 %v640, %v639
      %v644 = vpack.c.b16 %v642, %v641
      %v648 = vsel %vm305, %v625, 0
      %650 = vmatprep.subr.bf16.mxu0 0
      %651 = vmatpush1.bf16.msra.mxu0 %v643
      %652 = vmatprep.subr.bf16.mxu0 0
      %653 = vmatpush1.bf16.msra.mxu0 %v644
      %654 = vmatprep.subr.bf16.mxu0 0
      %655 = vmatpush1.bf16.msra.mxu0 0
      %656 = vmatprep.subr.bf16.mxu0 0
      %657 = vmatpush1.bf16.msra.mxu0 0
      %658 = vmatprep.subr.bf16.mxu0 0
      %659 = vmatpush1.bf16.msra.mxu0 0
      %660 = vmatprep.subr.bf16.mxu0 0
      %661 = vmatpush1.bf16.msra.mxu0 0
      %662 = vmatprep.subr.bf16.mxu0 0
      %663 = vmatpush1.bf16.msra.mxu0 0
      %664 = vmatprep.subr.bf16.mxu0 0
      %665 = vmatpush1.bf16.msra.mxu0 0
      %666 = vmatprep.subr.bf16.mxu0 0
      %667 = vmatpush1.bf16.msra.mxu0 0
      %668 = vmatprep.subr.bf16.mxu0 0
      %669 = vmatpush1.bf16.msra.mxu0 0
      %670 = vmatprep.subr.bf16.mxu0 0
      %671 = vmatpush1.bf16.msra.mxu0 0
      %672 = vmatprep.subr.bf16.mxu0 0
      %673 = vmatpush1.bf16.msra.mxu0 0
      %674 = vmatprep.subr.bf16.mxu0 0
      %675 = vmatpush1.bf16.msra.mxu0 0
      %676 = vmatprep.subr.bf16.mxu0 0
      %677 = vmatpush1.bf16.msra.mxu0 0
      %678 = vmatprep.subr.bf16.mxu0 0
      %679 = vmatpush1.bf16.msra.mxu0 0
      %680 = vmatprep.subr.bf16.mxu0 0
      %681 = vmatpush1.bf16.msra.mxu0 0
      %682 = vmatprep.mubr.bf16.mxu0 0
      %683 = vmatmul.mubr.bf16.gmra.mrb[0].mxu0 %v648
      %v684 = vpop.f32.mrb[0].mxu0
      %v685 = vadd.f32 %v634, %v684
      %v686 = vpop.f32.mrb[0].mxu0
      %v687 = vpop.f32.mrb[0].mxu0
      %v688 = vpop.f32.mrb[0].mxu0
      %689 = vdwg.mxu0
      %v690 = vadd.f32 %v329, %v685
      %v691 = vld [vmem:[%s1 + $0x4] sm:$0x1]
      %v692 = vld [vmem:[%s1 + $0x5] sm:$0x1]
      %v693 = vsel %vm305, %v690, 0.0
      %694 = vadd.xlane.f32.xlu0 %v693
      %v695 = vpop.xlane.xlu0 %694
      %v696 = vmul.f32 %v695, %v309
      %v697 = vsub.f32 %v690, %v696
      %v698 = vmul.f32 %v697, %v697
      %v699 = vsel %vm305, %v698, 0.0
      %700 = vadd.xlane.f32.xlu0 %v699
      %v701 = vpop.xlane.xlu0 %700
      %v702 = vmul.f32 %v701, %v309
      %v703 = vadd.f32 %v702, 1e-05
      %v704 = vrsqrt.pop %v703
      %v705 = vmul.f32 %v697, %v704
      %v706 = vlaneseq
      %v707 = vshrl.u32 %v706, 7
      %v708 = vsub.s32 0, %v707
      %v709 = vrot.slane %v691, %v708
      %v710 = vmul.f32 %v705, %v709
      %v711 = vlaneseq
      %v712 = vshrl.u32 %v711, 7
      %v713 = vsub.s32 0, %v712
      %v714 = vrot.slane %v692, %v713
      %v715 = vadd.f32 %v710, %v714
      %v716 = vpack.c.bf16 %v715, %v715
      %v717 = vld [vmem:[%s4] sm:$0xf]
      %v718 = vld [vmem:[%s4 + $0x4] sm:$0xf]
      %v719 = vld [vmem:[%s4 + $0x8] sm:$0xf]
      %v720 = vld [vmem:[%s4 + $0xc] sm:$0xf]
      %v721 = vld [vmem:[%s1 + $0x6] sm:$0x1]
      %v722 = vlaneseq
      %v723 = vshrl.u32 %v722, 7
      %v724 = vsub.s32 0, %v723
      %v725 = vrot.slane %v721, %v724
      %v730 = vunpack.c.l.b16 %v717
      %v731 = vunpack.c.l.b16 %v718
      %v732 = vunpack.c.l.b16 %v719
      %v733 = vunpack.c.l.b16 %v720
      %v734 = vpack.c.b16 %v731, %v730
      %v735 = vpack.c.b16 %v733, %v732
      %v739 = vsel %vm305, %v716, 0
      %741 = vmatprep.subr.bf16.mxu0 0
      %742 = vmatpush1.bf16.msra.mxu0 %v734
      %743 = vmatprep.subr.bf16.mxu0 0
      %744 = vmatpush1.bf16.msra.mxu0 %v735
      %745 = vmatprep.subr.bf16.mxu0 0
      %746 = vmatpush1.bf16.msra.mxu0 0
      %747 = vmatprep.subr.bf16.mxu0 0
      %748 = vmatpush1.bf16.msra.mxu0 0
      %749 = vmatprep.subr.bf16.mxu0 0
      %750 = vmatpush1.bf16.msra.mxu0 0
      %751 = vmatprep.subr.bf16.mxu0 0
      %752 = vmatpush1.bf16.msra.mxu0 0
      %753 = vmatprep.subr.bf16.mxu0 0
      %754 = vmatpush1.bf16.msra.mxu0 0
      %755 = vmatprep.subr.bf16.mxu0 0
      %756 = vmatpush1.bf16.msra.mxu0 0
      %757 = vmatprep.subr.bf16.mxu0 0
      %758 = vmatpush1.bf16.msra.mxu0 0
      %759 = vmatprep.subr.bf16.mxu0 0
      %760 = vmatpush1.bf16.msra.mxu0 0
      %761 = vmatprep.subr.bf16.mxu0 0
      %762 = vmatpush1.bf16.msra.mxu0 0
      %763 = vmatprep.subr.bf16.mxu0 0
      %764 = vmatpush1.bf16.msra.mxu0 0
      %765 = vmatprep.subr.bf16.mxu0 0
      %766 = vmatpush1.bf16.msra.mxu0 0
      %767 = vmatprep.subr.bf16.mxu0 0
      %768 = vmatpush1.bf16.msra.mxu0 0
      %769 = vmatprep.subr.bf16.mxu0 0
      %770 = vmatpush1.bf16.msra.mxu0 0
      %771 = vmatprep.subr.bf16.mxu0 0
      %772 = vmatpush1.bf16.msra.mxu0 0
      %773 = vmatprep.mubr.bf16.mxu0 0
      %774 = vmatmul.mubr.bf16.gmra.mrb[0].mxu0 %v739
      %v775 = vpop.f32.mrb[0].mxu0
      %v776 = vadd.f32 %v725, %v775
      %v777 = vpop.f32.mrb[0].mxu0
      %v778 = vpop.f32.mrb[0].mxu0
      %v779 = vpop.f32.mrb[0].mxu0
      %780 = vdwg.mxu0
      %v781 = vmul.f32 %v776, %v776
      %v782 = vmul.f32 %v776, %v781
      %v783 = vmul.f32 %v782, 0.044715
      %v784 = vadd.f32 %v776, %v783
      %v785 = vmul.f32 %v784, 0.7978846
      %v786 = vtanh.pop %v785
      %v787 = vadd.f32 %v786, 1.0
      %v788 = vmul.f32 %v787, 0.5
      %v789 = vmul.f32 %v776, %v788
      %v790 = vpack.c.bf16 %v789, %v789
      %v791 = vld [vmem:[%s5] sm:$0xf]
      %v792 = vld [vmem:[%s5 + $0x4] sm:$0xf]
      %v793 = vld [vmem:[%s5 + $0x8] sm:$0xf]
      %v794 = vld [vmem:[%s5 + $0xc] sm:$0xf]
      %v795 = vld [vmem:[%s5 + $0x10] sm:$0xf]
      %v796 = vld [vmem:[%s5 + $0x14] sm:$0xf]
      %v797 = vld [vmem:[%s5 + $0x18] sm:$0xf]
      %v798 = vld [vmem:[%s5 + $0x1c] sm:$0xf]
      %v799 = vld [vmem:[%s1 + $0x7] sm:$0x1]
      %v800 = vlaneseq
      %v801 = vshrl.u32 %v800, 7
      %v802 = vsub.s32 0, %v801
      %v803 = vrot.slane %v799, %v802
      %v812 = vunpack.c.l.b16 %v791
      %v813 = vunpack.c.l.b16 %v792
      %v814 = vunpack.c.l.b16 %v793
      %v815 = vunpack.c.l.b16 %v794
      %v816 = vunpack.c.l.b16 %v795
      %v817 = vunpack.c.l.b16 %v796
      %v818 = vunpack.c.l.b16 %v797
      %v819 = vunpack.c.l.b16 %v798
      %v820 = vpack.c.b16 %v813, %v812
      %v821 = vpack.c.b16 %v815, %v814
      %v822 = vpack.c.b16 %v817, %v816
      %v823 = vpack.c.b16 %v819, %v818
      %vm828 = vcmask 523264
      %v830 = vsel %vm828, %v790, 0
      %832 = vmatprep.subr.bf16.mxu0 0
      %833 = vmatpush1.bf16.msra.mxu0 %v820
      %834 = vmatprep.subr.bf16.mxu0 0
      %835 = vmatpush1.bf16.msra.mxu0 %v821
      %836 = vmatprep.subr.bf16.mxu0 0
      %837 = vmatpush1.bf16.msra.mxu0 %v822
      %838 = vmatprep.subr.bf16.mxu0 0
      %839 = vmatpush1.bf16.msra.mxu0 %v823
      %840 = vmatprep.subr.bf16.mxu0 0
      %841 = vmatpush1.bf16.msra.mxu0 0
      %842 = vmatprep.subr.bf16.mxu0 0
      %843 = vmatpush1.bf16.msra.mxu0 0
      %844 = vmatprep.subr.bf16.mxu0 0
      %845 = vmatpush1.bf16.msra.mxu0 0
      %846 = vmatprep.subr.bf16.mxu0 0
      %847 = vmatpush1.bf16.msra.mxu0 0
      %848 = vmatprep.subr.bf16.mxu0 0
      %849 = vmatpush1.bf16.msra.mxu0 0
      %850 = vmatprep.subr.bf16.mxu0 0
      %851 = vmatpush1.bf16.msra.mxu0 0
      %852 = vmatprep.subr.bf16.mxu0 0
      %853 = vmatpush1.bf16.msra.mxu0 0
      %854 = vmatprep.subr.bf16.mxu0 0
      %855 = vmatpush1.bf16.msra.mxu0 0
      %856 = vmatprep.subr.bf16.mxu0 0
      %857 = vmatpush1.bf16.msra.mxu0 0
      %858 = vmatprep.subr.bf16.mxu0 0
      %859 = vmatpush1.bf16.msra.mxu0 0
      %860 = vmatprep.subr.bf16.mxu0 0
      %861 = vmatpush1.bf16.msra.mxu0 0
      %862 = vmatprep.subr.bf16.mxu0 0
      %863 = vmatpush1.bf16.msra.mxu0 0
      %864 = vmatprep.mubr.bf16.mxu0 0
      %865 = vmatmul.mubr.bf16.gmra.mrb[0].mxu0 %v830
      %v866 = vpop.f32.mrb[0].mxu0
      %v867 = vadd.f32 %v803, %v866
      %v868 = vpop.f32.mrb[0].mxu0
      %v869 = vpop.f32.mrb[0].mxu0
      %v870 = vpop.f32.mrb[0].mxu0
      %871 = vdwg.mxu0
      %v872 = vadd.f32 %v715, %v867
      %v873 = vld [vmem:[%s1 + $0x8] sm:$0x1]
      %v874 = vld [vmem:[%s1 + $0x9] sm:$0x1]
      %v875 = vsel %vm305, %v872, 0.0
      %876 = vadd.xlane.f32.xlu0 %v875
      %v877 = vpop.xlane.xlu0 %876
      %v878 = vmul.f32 %v877, %v309
      %v879 = vsub.f32 %v872, %v878
      %v880 = vmul.f32 %v879, %v879
      %v881 = vsel %vm305, %v880, 0.0
      %882 = vadd.xlane.f32.xlu0 %v881
      %v883 = vpop.xlane.xlu0 %882
      %v884 = vmul.f32 %v883, %v309
      %v885 = vadd.f32 %v884, 1e-05
      %v886 = vrsqrt.pop %v885
      %v887 = vmul.f32 %v879, %v886
      %v888 = vlaneseq
      %v889 = vshrl.u32 %v888, 7
      %v890 = vsub.s32 0, %v889
      %v891 = vrot.slane %v873, %v890
      %v892 = vmul.f32 %v887, %v891
      %v893 = vlaneseq
      %v894 = vshrl.u32 %v893, 7
      %v895 = vsub.s32 0, %v894
      %v896 = vrot.slane %v874, %v895
      %v897 = vadd.f32 %v892, %v896
      %v898 = vpack.c.bf16 %v897, %v897
      %v899 = vld [vmem:[%s6] sm:$0xf]
      %v900 = vld [vmem:[%s6 + $0x4] sm:$0xf]
      %v901 = vld [vmem:[%s6 + $0x8] sm:$0xf]
      %v902 = vld [vmem:[%s6 + $0xc] sm:$0xf]
      %v903 = vld [vmem:[%s1 + $0xa] sm:$0x1]
      %v908 = vunpack.c.l.b16 %v899
      %v909 = vunpack.c.l.b16 %v900
      %v910 = vunpack.c.l.b16 %v901
      %v911 = vunpack.c.l.b16 %v902
      %v912 = vpack.c.b16 %v909, %v908
      %v913 = vpack.c.b16 %v911, %v910
      %v917 = vsel %vm305, %v898, 0
      %919 = vmatprep.subr.bf16.mxu0 0
      %920 = vmatpush1.bf16.msra.mxu0 %v912
      %921 = vmatprep.subr.bf16.mxu0 0
      %922 = vmatpush1.bf16.msra.mxu0 %v913
      %923 = vmatprep.subr.bf16.mxu0 0
      %924 = vmatpush1.bf16.msra.mxu0 0
      %925 = vmatprep.subr.bf16.mxu0 0
      %926 = vmatpush1.bf16.msra.mxu0 0
      %927 = vmatprep.subr.bf16.mxu0 0
      %928 = vmatpush1.bf16.msra.mxu0 0
      %929 = vmatprep.subr.bf16.mxu0 0
      %930 = vmatpush1.bf16.msra.mxu0 0
      %931 = vmatprep.subr.bf16.mxu0 0
      %932 = vmatpush1.bf16.msra.mxu0 0
      %933 = vmatprep.subr.bf16.mxu0 0
      %934 = vmatpush1.bf16.msra.mxu0 0
      %935 = vmatprep.subr.bf16.mxu0 0
      %936 = vmatpush1.bf16.msra.mxu0 0
      %937 = vmatprep.subr.bf16.mxu0 0
      %938 = vmatpush1.bf16.msra.mxu0 0
      %939 = vmatprep.subr.bf16.mxu0 0
      %940 = vmatpush1.bf16.msra.mxu0 0
      %941 = vmatprep.subr.bf16.mxu0 0
      %942 = vmatpush1.bf16.msra.mxu0 0
      %943 = vmatprep.subr.bf16.mxu0 0
      %944 = vmatpush1.bf16.msra.mxu0 0
      %945 = vmatprep.subr.bf16.mxu0 0
      %946 = vmatpush1.bf16.msra.mxu0 0
      %947 = vmatprep.subr.bf16.mxu0 0
      %948 = vmatpush1.bf16.msra.mxu0 0
      %949 = vmatprep.subr.bf16.mxu0 0
      %950 = vmatpush1.bf16.msra.mxu0 0
      %951 = vmatprep.mubr.bf16.mxu0 0
      %952 = vmatmul.mubr.bf16.gmra.mrb[0].mxu0 %v917
      %v953 = vpop.f32.mrb[0].mxu0
      %v954 = vadd.f32 %v903, %v953
      %v955 = vpop.f32.mrb[0].mxu0
      %v956 = vpop.f32.mrb[0].mxu0
      %v957 = vpop.f32.mrb[0].mxu0
      %958 = vdwg.mxu0
      %v959 = vtanh.pop %v954
      %v960 = vpack.c.bf16 %v959, %v959
      %v961 = vld [vmem:[%s7] sm:$0xf]
      %v962 = vld [vmem:[%s7 + $0x4] sm:$0xf]
      %v963 = vld [vmem:[%s7 + $0x8] sm:$0xf]
      %v964 = vld [vmem:[%s7 + $0xc] sm:$0xf]
      %v965 = vld [vmem:[%s1 + $0xb] sm:$0x1]
      %v970 = vunpack.c.l.b16 %v961
      %v971 = vunpack.c.l.b16 %v962
      %v972 = vunpack.c.l.b16 %v963
      %v973 = vunpack.c.l.b16 %v964
      %v974 = vpack.c.b16 %v971, %v970
      %v975 = vpack.c.b16 %v973, %v972
      %v979 = vsel %vm305, %v960, 0
      %981 = vmatprep.subr.bf16.mxu0 0
      %982 = vmatpush1.bf16.msra.mxu0 %v974
      %983 = vmatprep.subr.bf16.mxu0 0
      %984 = vmatpush1.bf16.msra.mxu0 %v975
      %985 = vmatprep.subr.bf16.mxu0 0
      %986 = vmatpush1.bf16.msra.mxu0 0
      %987 = vmatprep.subr.bf16.mxu0 0
      %988 = vmatpush1.bf16.msra.mxu0 0
      %989 = vmatprep.subr.bf16.mxu0 0
      %990 = vmatpush1.bf16.msra.mxu0 0
      %991 = vmatprep.subr.bf16.mxu0 0
      %992 = vmatpush1.bf16.msra.mxu0 0
      %993 = vmatprep.subr.bf16.mxu0 0
      %994 = vmatpush1.bf16.msra.mxu0 0
      %995 = vmatprep.subr.bf16.mxu0 0
      %996 = vmatpush1.bf16.msra.mxu0 0
      %997 = vmatprep.subr.bf16.mxu0 0
      %998 = vmatpush1.bf16.msra.mxu0 0
      %999 = vmatprep.subr.bf16.mxu0 0
      %1000 = vmatpush1.bf16.msra.mxu0 0
      %1001 = vmatprep.subr.bf16.mxu0 0
      %1002 = vmatpush1.bf16.msra.mxu0 0
      %1003 = vmatprep.subr.bf16.mxu0 0
      %1004 = vmatpush1.bf16.msra.mxu0 0
      %1005 = vmatprep.subr.bf16.mxu0 0
      %1006 = vmatpush1.bf16.msra.mxu0 0
      %1007 = vmatprep.subr.bf16.mxu0 0
      %1008 = vmatpush1.bf16.msra.mxu0 0
      %1009 = vmatprep.subr.bf16.mxu0 0
      %1010 = vmatpush1.bf16.msra.mxu0 0
      %1011 = vmatprep.subr.bf16.mxu0 0
      %1012 = vmatpush1.bf16.msra.mxu0 0
      %1013 = vmatprep.mubr.bf16.mxu0 0
      %1014 = vmatmul.mubr.bf16.gmra.mrb[0].mxu0 %v979
      %v1015 = vpop.f32.mrb[0].mxu0
      %v1016 = vadd.f32 %v965, %v1015
      %v1017 = vpop.f32.mrb[0].mxu0
      %v1018 = vpop.f32.mrb[0].mxu0
      %v1019 = vpop.f32.mrb[0].mxu0
      %1020 = vdwg.mxu0
      %v1021 = vlaneseq
      %v1022 = vshrl.u32 %v1021, 7
      %v1023 = vsub.s32 0, %v1022
      %v1024 = vrot.slane %v1016, %v1023
      %1025 = vst [vmem:[%s300] sm:$0xff] %v1024
      %p1026 = scmp.lt.s32.totalorder %s19, 3
      %s1027 = scalar_select %p1026, %s19, 3
      %s1028 = smul.addr %s1027, 8
      %s1029 = scalar_lea.vmem %s8, %s1028
      // Predicated region
      $region53: #{model_forward.1} parent=51 // pred_check
        %p1030 = pneg %p210
      $region54: #{model_forward.1} parent=51 // pred_check_branch
        %1032 = sbr.rel (%p1030) target = $region56
      $region55: #{model_forward.1} parent=51 // pred_region
        _
      $region56: #{model_forward.1} parent=51 // pred_fallthru
        _
    $region52: #{model_forward.1} parent=5 // pred_fallthru
      _
    %p1033 = scmp.le.s32.totalorder 2, %s14
    // Predicated region
    $region57: #{model_forward.1} parent=5 // pred_check
      %p1034 = pneg %p1033
    $region58: #{model_forward.1} parent=5 // pred_check_branch
      %1036 = sbr.rel (%p1034) target = $region60
    $region59: #{model_forward.1} parent=5 // pred_region
      %s1037 = ssub.s32 %s14, 2
      // Predicated region
      $region61: #{model_forward.1} parent=59 // pred_check
        %p1038 = pneg %p216
      $region62: #{model_forward.1} parent=59 // pred_check_branch
        %1040 = sbr.rel (%p1038) target = $region64
      $region63: #{model_forward.1} parent=59 // pred_region
        %p1041 = scmp.lt.s32.totalorder %s20, 3
        %s1042 = scalar_select %p1041, %s20, 3
        %s1043 = smul.addr %s1042, 8
        %s1044 = scalar_lea.vmem %s8, %s1043
      $region64: #{model_forward.1} parent=59 // pred_fallthru
        _
    $region60: #{model_forward.1} parent=5 // pred_fallthru
      _
  $region6: #{model_forward.1} parent=0 // loop_footer
    %s18 = sadd.s32 1, %s14
  $region7: #{model_forward.1} parent=0 // loop_footer_branch
    %13 = sbr.rel target = $region3
  $region8: #{model_forward.1} parent=0 // loop_exit
    _

</llo_original>
